<compile_context>
chip_gen: v7x
topology: tpu7x:2x2x1
jax: 0.10.0
libtpu: 0.0.40
codegen_flags: <defaults>
</compile_context>

<pallas_src>
import functools

import jax
import jax.numpy as jnp
from jax.experimental import pallas as pl
from jax.experimental.pallas import tpu as pltpu


def _round_up(x, m):
    return (x + m - 1) // m * m


def _linear_head_kernel(x_ref,
                        w1_ref, b1_ref, w2_ref, b2_ref,
                        w3_ref, b3_ref, w4_ref, b4_ref,
                        o_ref, acc_ref, *, inv_hw, tail_len):
    hw_step = pl.program_id(1)
    last = pl.num_programs(1) - 1
    bt, C, hw_blk = x_ref.shape

    @pl.when(hw_step == 0)
    def _init():
        acc_ref[...] = jnp.zeros_like(acc_ref)

    # ---- streamed adaptive-average-pool, reduced on the MXU ----
    ones = jnp.ones((hw_blk, 1), jnp.float32)

    def _accumulate(x):
        # (bt, C, hw_blk) -> (bt*C, hw_blk) is layout-free (hw is the lane
        # axis); ones-vector matmul accumulates the HW sum in f32 on the MXU.
        x2d = x.reshape(bt * C, hw_blk)
        acc_ref[...] += jnp.dot(
            x2d, ones, preferred_element_type=jnp.float32).reshape(bt, C)

    if tail_len:  # static: HW is not a multiple of hw_tile
        @pl.when(hw_step != last)
        def _full_chunk():
            _accumulate(x_ref[...])

        @pl.when(hw_step == last)
        def _tail_chunk():
            # Mask the ragged tail (edge-block padding contents are
            # unspecified); NaN-safe because the select runs before the dot.
            lane = jax.lax.broadcasted_iota(jnp.int32, (bt, C, hw_blk), 2)
            _accumulate(jnp.where(lane < tail_len, x_ref[...], 0.0))
    else:
        _accumulate(x_ref[...])

    @pl.when(hw_step == last)
    def _finalize():
        pooled = acc_ref[...] * inv_hw                 # divide by TRUE H*W
        # BatchNorm1d (eval) is already folded into (w1, b1).
        h = jnp.dot(pooled, w1_ref[...], preferred_element_type=jnp.float32) + b1_ref[...]
        h = jnp.maximum(h, 0.0)
        h = jnp.dot(h, w2_ref[...], preferred_element_type=jnp.float32) + b2_ref[...]
        h = jnp.maximum(h, 0.0)
        h = jnp.dot(h, w3_ref[...], preferred_element_type=jnp.float32) + b3_ref[...]
        logits = jnp.dot(h, w4_ref[...], preferred_element_type=jnp.float32) + b4_ref[...]

        m = jnp.max(logits, axis=-1, keepdims=True)
        e = jnp.exp(logits - m)
        # Exact softmax normalization: finalize runs once per batch tile.
        o_ref[...] = e / jnp.sum(e, axis=-1, keepdims=True)


def _select_tiles(B, C, HW, out_dim, weight_bytes, b_tile, hw_tile):
    """Generation-/C-aware tile sizes and a VMEM limit that fits the chip."""
    try:
        vmem_cap = int(pltpu.get_tpu_info().vmem_capacity_bytes)
    except Exception:
        vmem_cap = 64 * 2**20          # conservative: v7x per-TensorCore VMEM
    budget = int(0.70 * vmem_cap)

    if b_tile is None:
        if B <= 8:
            b_tile = B                  # exact batch tile (no padding needed)
        else:
            # >=2 batch tiles whenever possible so both v7x TensorCores get
            # work on the "parallel" axis; sublane-aligned, capped at 256.
            b_tile = min(256, _round_up((B + 1) // 2, 8))

    if hw_tile is None:
        if HW <= 128:
            hw_tile = HW                # single full-extent chunk
        else:
            hw_tile = min(2048, _round_up(HW, 128))

    def need(bt, ht):
        return (2 * bt * C * ht * 4     # double-buffered f32 x blocks
                + 2 * weight_bytes      # resident weights/biases (2x alloc)
                + bt * C * 4            # f32 pooling accumulator
                + 2 * bt * out_dim * 4)  # output block

    # Fit the budget: shrink hw_tile first (keep >= 512 when possible), then
    # b_tile, then hw_tile the rest of the way down to 128.
    while need(b_tile, hw_tile) > budget and hw_tile > 512:
        hw_tile -= 128
    while need(b_tile, hw_tile) > budget and b_tile > 8:
        b_tile -= 8
    while need(b_tile, hw_tile) > budget and hw_tile > 128:
        hw_tile -= 128

    vmem_limit = min(int(0.9 * vmem_cap),
                     max(2 * need(b_tile, hw_tile), 32 * 2**20))
    return b_tile, hw_tile, int(vmem_limit)


@functools.partial(jax.jit, static_argnames=("output_dim", "b_tile", "hw_tile"))
def linear_head_forward(x_nchw, params, output_dim, b_tile=None, hw_tile=None):
    """x_nchw: (B, C, H, W) float32. Returns (B, output_dim) float32."""
    B, C, H, W = x_nchw.shape
    HW = H * W

    # ---- fold BatchNorm1d (eval) into the first Linear ----
    eps = 1e-5
    scale = params["bn_gamma"] / jnp.sqrt(params["bn_var"] + eps)   # (C,)
    shift = params["bn_beta"] - params["bn_mean"] * scale           # (C,)
    w1 = scale[:, None] * params["w1"]                              # (C, 256)
    b1 = shift @ params["w1"] + params["b1"]                        # (256,)

    weights = (
        w1, b1.reshape(1, -1),
        params["w2"], params["b2"].reshape(1, -1),
        params["w3"], params["b3"].reshape(1, -1),
        params["w4"], params["b4"].reshape(1, -1),
    )
    weight_bytes = sum(int(w.size) * 4 for w in weights)

    b_tile, hw_tile, vmem_limit = _select_tiles(
        B, C, HW, output_dim, weight_bytes, b_tile, hw_tile)

    # Stream the original f32 activations directly (collapsing H,W is a
    # metadata-only reshape): no pad, no cast, no extra HBM pass.
    x = x_nchw.reshape(B, C, HW)

    grid = (pl.cdiv(B, b_tile), pl.cdiv(HW, hw_tile))

    x_spec = pl.BlockSpec((b_tile, C, hw_tile), lambda i, j: (i, 0, j))
    w_specs = [pl.BlockSpec(w.shape, lambda i, j: (0, 0)) for w in weights]
    out_spec = pl.BlockSpec((b_tile, output_dim), lambda i, j: (i, 0))

    kernel = functools.partial(_linear_head_kernel,
                               inv_hw=1.0 / float(HW),
                               tail_len=HW % hw_tile)

    out = pl.pallas_call(
        kernel,
        out_shape=jax.ShapeDtypeStruct((B, output_dim), jnp.float32),
        grid_spec=pltpu.PrefetchScalarGridSpec(
            num_scalar_prefetch=0,
            grid=grid,
            in_specs=[x_spec] + w_specs,
            out_specs=out_spec,
            scratch_shapes=[pltpu.VMEM((b_tile, C), jnp.float32)],
        ),
        compiler_params=pltpu.CompilerParams(
            dimension_semantics=("parallel", "arbitrary"),
            vmem_limit_bytes=vmem_limit,
        ),
    )(x, *weights)
    return out


def init_params(key, input_dim, output_dim):
    """Deterministic synthetic parameters matching the module's shapes."""
    ks = jax.random.split(key, 4)
    dims = [(input_dim, 256), (256, 128), (128, 64), (64, output_dim)]
    params = {}
    for i, ((din, dout), k) in enumerate(zip(dims, ks), start=1):
        params[f"w{i}"] = jax.random.normal(k, (din, dout), jnp.float32) * 0.02
        params[f"b{i}"] = jnp.zeros((dout,), jnp.float32)
    # BatchNorm1d default init / running stats
    params["bn_gamma"] = jnp.ones((input_dim,), jnp.float32)
    params["bn_beta"] = jnp.zeros((input_dim,), jnp.float32)
    params["bn_mean"] = jnp.zeros((input_dim,), jnp.float32)
    params["bn_var"] = jnp.ones((input_dim,), jnp.float32)
    return params


def _reference(x_nchw, params, output_dim):
    """Pure-JAX f32 reference matching the PyTorch eval forward."""
    B, C, H, W = x_nchw.shape
    pooled = jnp.mean(x_nchw.reshape(B, C, -1), axis=-1)
    eps = 1e-5
    scale = params["bn_gamma"] / jnp.sqrt(params["bn_var"] + eps)
    shift = params["bn_beta"] - params["bn_mean"] * scale
    h = pooled * scale + shift
    h = jnp.maximum(h @ params["w1"] + params["b1"], 0.0)
    h = jnp.maximum(h @ params["w2"] + params["b2"], 0.0)
    h = h @ params["w3"] + params["b3"]
    logits = h @ params["w4"] + params["b4"]
    return jax.nn.softmax(logits, axis=-1)


if __name__ == "__main__":
    key = jax.random.PRNGKey(0)
    k_x1, k_x2, k_p = jax.random.split(key, 3)

    C, OUTPUT_DIM = 32, 8
    params = init_params(k_p, C, OUTPUT_DIM)

    # Case 1: HW divides evenly; hw_tile=128 forces 2 streamed pooling steps
    # (init / accumulate / finalize path), no tail mask.
    x1 = jax.random.normal(k_x1, (2, C, 16, 16), jnp.float32)
    out1 = jax.block_until_ready(
        linear_head_forward(x1, params, OUTPUT_DIM, hw_tile=128))
    assert out1.shape == (2, OUTPUT_DIM)
    assert jnp.allclose(jnp.sum(out1, axis=1), 1.0, atol=1e-5)
    assert jnp.allclose(out1, _reference(x1, params, OUTPUT_DIM),
                        atol=1e-4, rtol=1e-4)

    # Case 2: ragged HW (18*18 = 324 -> 3 steps, last chunk masked in-kernel).
    x2 = jax.random.normal(k_x2, (4, C, 18, 18), jnp.float32)
    out2 = jax.block_until_ready(
        linear_head_forward(x2, params, OUTPUT_DIM, hw_tile=128))
    assert out2.shape == (4, OUTPUT_DIM)
    assert jnp.allclose(out2, _reference(x2, params, OUTPUT_DIM),
                        atol=1e-4, rtol=1e-4)

    # Case 3: default generation-aware tile selection (single masked chunk).
    out3 = jax.block_until_ready(linear_head_forward(x2, params, OUTPUT_DIM))
    assert jnp.allclose(out3, _reference(x2, params, OUTPUT_DIM),
                        atol=1e-4, rtol=1e-4)

    print("KERNEL_OK")
</pallas_src>

<mosaic_0001>
module attributes {stable_mosaic.version = 11 : i64} {
  func.func @_linear_head_kernel(%arg0: i32, %arg1: i32, %arg2: memref<2x32x128xf32, #tpu.memory_space<vmem>>, %arg3: memref<32x256xf32, #tpu.memory_space<vmem>>, %arg4: memref<1x256xf32, #tpu.memory_space<vmem>>, %arg5: memref<256x128xf32, #tpu.memory_space<vmem>>, %arg6: memref<1x128xf32, #tpu.memory_space<vmem>>, %arg7: memref<128x64xf32, #tpu.memory_space<vmem>>, %arg8: memref<1x64xf32, #tpu.memory_space<vmem>>, %arg9: memref<64x8xf32, #tpu.memory_space<vmem>>, %arg10: memref<1x8xf32, #tpu.memory_space<vmem>>, %arg11: memref<2x8xf32, #tpu.memory_space<vmem>>, %arg12: memref<2x32xf32, #tpu.memory_space<vmem>>) attributes {dimension_semantics = [#tpu.dimension_semantics<parallel>, #tpu.dimension_semantics<arbitrary>], iteration_bounds = array<i64: 1, 2>, scalar_prefetch = 0 : i64, scratch_operands = 1 : i64, tpu.core_type = #tpu.core_type<tc>, window_params = [{transform_indices = @transform_0, window_bounds = array<i64: 2, 32, 128>}, {pipeline_mode = #tpu.pipeline_mode<synchronous>, transform_indices = @transform_1, window_bounds = array<i64: 32, 256>}, {pipeline_mode = #tpu.pipeline_mode<synchronous>, transform_indices = @transform_2, window_bounds = array<i64: 1, 256>}, {pipeline_mode = #tpu.pipeline_mode<synchronous>, transform_indices = @transform_3, window_bounds = array<i64: 256, 128>}, {pipeline_mode = #tpu.pipeline_mode<synchronous>, transform_indices = @transform_4, window_bounds = array<i64: 1, 128>}, {pipeline_mode = #tpu.pipeline_mode<synchronous>, transform_indices = @transform_5, window_bounds = array<i64: 128, 64>}, {pipeline_mode = #tpu.pipeline_mode<synchronous>, transform_indices = @transform_6, window_bounds = array<i64: 1, 64>}, {pipeline_mode = #tpu.pipeline_mode<synchronous>, transform_indices = @transform_7, window_bounds = array<i64: 64, 8>}, {pipeline_mode = #tpu.pipeline_mode<synchronous>, transform_indices = @transform_8, window_bounds = array<i64: 1, 8>}, {transform_indices = @transform_9, window_bounds = array<i64: 2, 8>}]} {
    %c0_i32 = arith.constant 0 : i32
    %0 = arith.cmpi eq, %arg1, %c0_i32 : i32
    %1 = arith.extui %0 : i1 to i32
    %c0_i32_0 = arith.constant 0 : i32
    %2 = arith.cmpi ne, %1, %c0_i32_0 : i32
    scf.if %2 {
      %cst_9 = arith.constant 0.000000e+00 : f32
      %14 = vector.broadcast %cst_9 : f32 to vector<2x32xf32>
      %c0_10 = arith.constant 0 : index
      %c0_11 = arith.constant 0 : index
      %15 = vector.load %arg12[%c0_10, %c0_11] : memref<2x32xf32, #tpu.memory_space<vmem>>, vector<2x32xf32>
      tpu.vector_store %arg12[%c0_10, %c0_11], %14 {strides = array<i32>} : memref<2x32xf32, #tpu.memory_space<vmem>>, vector<2x32xf32>,
    } else {
    }
    %cst = arith.constant 1.000000e+00 : f32
    %3 = vector.broadcast %cst : f32 to vector<128x1xf32>
    %c0 = arith.constant 0 : index
    %c0_1 = arith.constant 0 : index
    %c0_2 = arith.constant 0 : index
    %4 = vector.load %arg2[%c0, %c0_1, %c0_2] : memref<2x32x128xf32, #tpu.memory_space<vmem>>, vector<2x32x128xf32>
    %5 = vector.shape_cast %4 : vector<2x32x128xf32> to vector<64x128xf32>
    %c0_3 = arith.constant 0 : index
    %c0_4 = arith.constant 0 : index
    %6 = vector.load %arg12[%c0_3, %c0_4] : memref<2x32xf32, #tpu.memory_space<vmem>>, vector<2x32xf32>
    %cst_5 = arith.constant dense<0.000000e+00> : vector<64x1xf32>
    %7 = tpu.matmul %5, %3, %cst_5 {dimension_numbers = #tpu.dot_dimension_numbers<[1], [0], [0], [1], [0, 0, 1, 1], [], []>} : vector<64x128xf32>, vector<128x1xf32>, vector<64x1xf32> -> vector<64x1xf32>
    %8 = vector.shape_cast %7 : vector<64x1xf32> to vector<2x32xf32>
    %9 = arith.addf %6, %8 : vector<2x32xf32>
    %c0_6 = arith.constant 0 : index
    %c0_7 = arith.constant 0 : index
    %10 = vector.load %arg12[%c0_6, %c0_7] : memref<2x32xf32, #tpu.memory_space<vmem>>, vector<2x32xf32>
    tpu.vector_store %arg12[%c0_6, %c0_7], %9 {strides = array<i32>} : memref<2x32xf32, #tpu.memory_space<vmem>>, vector<2x32xf32>,
    %c1_i32 = arith.constant 1 : i32
    %11 = arith.cmpi eq, %arg1, %c1_i32 : i32
    %12 = arith.extui %11 : i1 to i32
    %c0_i32_8 = arith.constant 0 : i32
    %13 = arith.cmpi ne, %12, %c0_i32_8 : i32
    scf.if %13 {
      %c0_9 = arith.constant 0 : index
      %c0_10 = arith.constant 0 : index
      %14 = vector.load %arg12[%c0_9, %c0_10] : memref<2x32xf32, #tpu.memory_space<vmem>>, vector<2x32xf32>
      %cst_11 = arith.constant 3.906250e-03 : f32
      %15 = vector.broadcast %cst_11 : f32 to vector<2x32xf32>
      %16 = arith.mulf %14, %15 : vector<2x32xf32>
      %c0_12 = arith.constant 0 : index
      %c0_13 = arith.constant 0 : index
      %17 = vector.load %arg3[%c0_12, %c0_13] : memref<32x256xf32, #tpu.memory_space<vmem>>, vector<32x256xf32>
      %cst_14 = arith.constant dense<0.000000e+00> : vector<2x256xf32>
      %18 = tpu.matmul %16, %17, %cst_14 {dimension_numbers = #tpu.dot_dimension_numbers<[1], [0], [0], [1], [0, 0, 1, 1], [], []>} : vector<2x32xf32>, vector<32x256xf32>, vector<2x256xf32> -> vector<2x256xf32>
      %c0_15 = arith.constant 0 : index
      %c0_16 = arith.constant 0 : index
      %19 = vector.load %arg4[%c0_15, %c0_16] : memref<1x256xf32, #tpu.memory_space<vmem>>, vector<1x256xf32>
      %20 = vector.broadcast %19 : vector<1x256xf32> to vector<2x256xf32>
      %21 = arith.addf %18, %20 : vector<2x256xf32>
      %cst_17 = arith.constant 0.000000e+00 : f32
      %22 = vector.broadcast %cst_17 : f32 to vector<2x256xf32>
      %23 = arith.maximumf %21, %22 : vector<2x256xf32>
      %c0_18 = arith.constant 0 : index
      %c0_19 = arith.constant 0 : index
      %24 = vector.load %arg5[%c0_18, %c0_19] : memref<256x128xf32, #tpu.memory_space<vmem>>, vector<256x128xf32>
      %cst_20 = arith.constant dense<0.000000e+00> : vector<2x128xf32>
      %25 = tpu.matmul %23, %24, %cst_20 {dimension_numbers = #tpu.dot_dimension_numbers<[1], [0], [0], [1], [0, 0, 1, 1], [], []>} : vector<2x256xf32>, vector<256x128xf32>, vector<2x128xf32> -> vector<2x128xf32>
      %c0_21 = arith.constant 0 : index
      %c0_22 = arith.constant 0 : index
      %26 = vector.load %arg6[%c0_21, %c0_22] : memref<1x128xf32, #tpu.memory_space<vmem>>, vector<1x128xf32>
      %27 = vector.broadcast %26 : vector<1x128xf32> to vector<2x128xf32>
      %28 = arith.addf %25, %27 : vector<2x128xf32>
      %cst_23 = arith.constant 0.000000e+00 : f32
      %29 = vector.broadcast %cst_23 : f32 to vector<2x128xf32>
      %30 = arith.maximumf %28, %29 : vector<2x128xf32>
      %c0_24 = arith.constant 0 : index
      %c0_25 = arith.constant 0 : index
      %31 = vector.load %arg7[%c0_24, %c0_25] : memref<128x64xf32, #tpu.memory_space<vmem>>, vector<128x64xf32>
      %cst_26 = arith.constant dense<0.000000e+00> : vector<2x64xf32>
      %32 = tpu.matmul %30, %31, %cst_26 {dimension_numbers = #tpu.dot_dimension_numbers<[1], [0], [0], [1], [0, 0, 1, 1], [], []>} : vector<2x128xf32>, vector<128x64xf32>, vector<2x64xf32> -> vector<2x64xf32>
      %c0_27 = arith.constant 0 : index
      %c0_28 = arith.constant 0 : index
      %33 = vector.load %arg8[%c0_27, %c0_28] : memref<1x64xf32, #tpu.memory_space<vmem>>, vector<1x64xf32>
      %34 = vector.broadcast %33 : vector<1x64xf32> to vector<2x64xf32>
      %35 = arith.addf %32, %34 : vector<2x64xf32>
      %c0_29 = arith.constant 0 : index
      %c0_30 = arith.constant 0 : index
      %36 = vector.load %arg9[%c0_29, %c0_30] : memref<64x8xf32, #tpu.memory_space<vmem>>, vector<64x8xf32>
      %cst_31 = arith.constant dense<0.000000e+00> : vector<2x8xf32>
      %37 = tpu.matmul %35, %36, %cst_31 {dimension_numbers = #tpu.dot_dimension_numbers<[1], [0], [0], [1], [0, 0, 1, 1], [], []>} : vector<2x64xf32>, vector<64x8xf32>, vector<2x8xf32> -> vector<2x8xf32>
      %c0_32 = arith.constant 0 : index
      %c0_33 = arith.constant 0 : index
      %38 = vector.load %arg10[%c0_32, %c0_33] : memref<1x8xf32, #tpu.memory_space<vmem>>, vector<1x8xf32>
      %39 = vector.broadcast %38 : vector<1x8xf32> to vector<2x8xf32>
      %40 = arith.addf %37, %39 : vector<2x8xf32>
      %cst_34 = arith.constant dense<0xFF800000> : vector<2xf32>
      %41 = vector.multi_reduction <maximumf>, %40, %cst_34 [1] : vector<2x8xf32> to vector<2xf32>
      %42 = vector.shape_cast %41 : vector<2xf32> to vector<2x1xf32>
      %43 = vector.broadcast %42 : vector<2x1xf32> to vector<2x8xf32>
      %44 = arith.subf %40, %43 : vector<2x8xf32>
      %45 = math.exp %44 : vector<2x8xf32>
      %cst_35 = arith.constant dense<0.000000e+00> : vector<2xf32>
      %46 = vector.multi_reduction <add>, %45, %cst_35 [1] : vector<2x8xf32> to vector<2xf32>
      %47 = vector.shape_cast %46 : vector<2xf32> to vector<2x1xf32>
      %48 = vector.broadcast %47 : vector<2x1xf32> to vector<2x8xf32>
      %49 = arith.divf %45, %48 : vector<2x8xf32>
      %c0_36 = arith.constant 0 : index
      %c0_37 = arith.constant 0 : index
      %50 = vector.load %arg11[%c0_36, %c0_37] : memref<2x8xf32, #tpu.memory_space<vmem>>, vector<2x8xf32>
      tpu.vector_store %arg11[%c0_36, %c0_37], %49 {strides = array<i32>} : memref<2x8xf32, #tpu.memory_space<vmem>>, vector<2x8xf32>,
    } else {
    }
    return
  }
  func.func @transform_0(%arg0: i32, %arg1: i32) -> (i32, i32, i32) {
    %c0_i32 = arith.constant 0 : i32
    %c0_i32_0 = arith.constant 0 : i32
    return %arg0, %c0_i32, %arg1 : i32, i32, i32
  }
  func.func @transform_1(%arg0: i32, %arg1: i32) -> (i32, i32) {
    %c0_i32 = arith.constant 0 : i32
    %c0_i32_0 = arith.constant 0 : i32
    %c0_i32_1 = arith.constant 0 : i32
    return %c0_i32, %c0_i32_0 : i32, i32
  }
  func.func @transform_2(%arg0: i32, %arg1: i32) -> (i32, i32) {
    %c0_i32 = arith.constant 0 : i32
    %c0_i32_0 = arith.constant 0 : i32
    %c0_i32_1 = arith.constant 0 : i32
    return %c0_i32, %c0_i32_0 : i32, i32
  }
  func.func @transform_3(%arg0: i32, %arg1: i32) -> (i32, i32) {
    %c0_i32 = arith.constant 0 : i32
    %c0_i32_0 = arith.constant 0 : i32
    %c0_i32_1 = arith.constant 0 : i32
    return %c0_i32, %c0_i32_0 : i32, i32
  }
  func.func @transform_4(%arg0: i32, %arg1: i32) -> (i32, i32) {
    %c0_i32 = arith.constant 0 : i32
    %c0_i32_0 = arith.constant 0 : i32
    %c0_i32_1 = arith.constant 0 : i32
    return %c0_i32, %c0_i32_0 : i32, i32
  }
  func.func @transform_5(%arg0: i32, %arg1: i32) -> (i32, i32) {
    %c0_i32 = arith.constant 0 : i32
    %c0_i32_0 = arith.constant 0 : i32
    %c0_i32_1 = arith.constant 0 : i32
    return %c0_i32, %c0_i32_0 : i32, i32
  }
  func.func @transform_6(%arg0: i32, %arg1: i32) -> (i32, i32) {
    %c0_i32 = arith.constant 0 : i32
    %c0_i32_0 = arith.constant 0 : i32
    %c0_i32_1 = arith.constant 0 : i32
    return %c0_i32, %c0_i32_0 : i32, i32
  }
  func.func @transform_7(%arg0: i32, %arg1: i32) -> (i32, i32) {
    %c0_i32 = arith.constant 0 : i32
    %c0_i32_0 = arith.constant 0 : i32
    %c0_i32_1 = arith.constant 0 : i32
    return %c0_i32, %c0_i32_0 : i32, i32
  }
  func.func @transform_8(%arg0: i32, %arg1: i32) -> (i32, i32) {
    %c0_i32 = arith.constant 0 : i32
    %c0_i32_0 = arith.constant 0 : i32
    %c0_i32_1 = arith.constant 0 : i32
    return %c0_i32, %c0_i32_0 : i32, i32
  }
  func.func @transform_9(%arg0: i32, %arg1: i32) -> (i32, i32) {
    %c0_i32 = arith.constant 0 : i32
    %c0_i32_0 = arith.constant 0 : i32
    return %arg0, %c0_i32 : i32, i32
  }
}

</mosaic_0001>

<llo_original>
// kernel: linear_head_forward.1
$region0: #{linear_head_forward.1}
  #allocation0 [shape = 'u32[]', space=smem, size = 0x4, offset = 0x4, fixed_abs, tag = 'smem constant byte address 0x4 - core index']
  #allocation1 [shape = 'u32[144,128]{1,0:T(1,128)}', space=vmem, size = 0x12000, scoped, tag = 'internal scratch']
  #allocation2 [shape = 'f32[2,32]{1,0:T(2,128)}', space=vmem, size = 0x400, scoped, tag = 'scratch operand']
  %s0 = inlined_call_operand.vmem [shape: f32[2,32,256], index: 0, kind: input, shape index: {}]
  %s1 = inlined_call_operand.vmem [shape: f32[32,256], index: 1, kind: input, shape index: {}]
  %s2 = inlined_call_operand.vmem [shape: f32[1,256], index: 2, kind: input, shape index: {}]
  %s3 = inlined_call_operand.vmem [shape: f32[256,128], index: 3, kind: input, shape index: {}]
  %s4 = inlined_call_operand.vmem [shape: f32[1,128], index: 4, kind: input, shape index: {}]
  %s5 = inlined_call_operand.vmem [shape: f32[128,64], index: 5, kind: input, shape index: {}]
  %s6 = inlined_call_operand.vmem [shape: f32[1,64], index: 6, kind: input, shape index: {}]
  %s7 = inlined_call_operand.vmem [shape: f32[64,8], index: 7, kind: input, shape index: {}]
  %s8 = inlined_call_operand.vmem [shape: f32[1,8], index: 8, kind: input, shape index: {}]
  %s9 = inlined_call_operand.hbm [shape: f32[2,8], index: 9, kind: output, shape index: {}]
  %s10 = sld [smem:[#allocation0]]
  $region115: #{linear_head_forward.1} parent=0
    _
  %s12 = ssub.s32 1, %s10
  %s13 = scalar_select 0, %s12, %s10
  $region1: #{linear_head_forward.1} parent=0
    #allocation3 [shape = 'u8[65536]{0}', space=vmem, size = 0x10000, scoped, tag = 'input window, operand 0']
    #allocation4 [shape = 'u8[1024]{0}', space=vmem, size = 0x400, scoped, tag = 'output window, operand 0, single buffered']
    #allocation5 [shape = 's32[2]{0}', space=sflag, size = 0x8, scoped, tag = 'scoped memory for linear_head_forward.1']
    %14 = vsyncpa [#allocation5], 0
    loop: start=0, step=1, limit=4
    $region2: #{linear_head_forward.1} parent=1 // loop_pre_header
      _
    $region3: #{linear_head_forward.1} parent=1 // loop_header
      %s16 = sphi 0, %s20
      %p17 = scmp.ge.s32.totalorder %s16, 4
      %s23 = sphi 0, %s35
      %s24 = sphi 0, %s31
      %s25 = sphi 0, %s23
      %s26 = sphi 0, %s24
      %s27 = sphi 0, %s25
      %s28 = sphi 0, %s26
      %s40 = sphi 0, %s42
      %s43 = sphi 0, %s40
      %s44 = sphi 0, %s43
      %s60 = sphi 0, %s44
      %s64 = sphi 0, %s64
      %s66 = sphi 0, %s64
      %s67 = sphi 0, %s66
      %s81 = sphi 0, %s67
      %s85 = sphi 0, %s85
      %s87 = sphi 0, %s85
      %s88 = sphi 0, %s87
      %s102 = sphi 0, %s88
      %s106 = sphi 0, %s106
      %s108 = sphi 0, %s106
      %s109 = sphi 0, %s108
      %s123 = sphi 0, %s109
      %s127 = sphi 0, %s127
      %s129 = sphi 0, %s127
      %s130 = sphi 0, %s129
      %s144 = sphi 0, %s130
      %s148 = sphi 0, %s148
      %s150 = sphi 0, %s148
      %s151 = sphi 0, %s150
      %s165 = sphi 0, %s151
      %s169 = sphi 0, %s169
      %s171 = sphi 0, %s169
      %s172 = sphi 0, %s171
      %s186 = sphi 0, %s172
      %s190 = sphi 0, %s190
      %s192 = sphi 0, %s190
      %s193 = sphi 0, %s192
      %s207 = sphi 0, %s193
      %s211 = sphi 0, %s211
      %s213 = sphi 0, %s211
      %s214 = sphi 0, %s213
      %s228 = sphi 0, %s214
      %s234 = sphi 0, %s236
      %s237 = sphi 0, %s234
      %s238 = sphi 0, %s237
      %s254 = sphi 0, %s238
    $region4: #{linear_head_forward.1} parent=1 // loop_header_branch
      %19 = sbr.rel (%p17) target = $region8
    $region5: #{linear_head_forward.1} parent=1 // loop_body
      %s21 = ssub.s32 %s16, 1
      %s22 = ssub.s32 %s16, 2
      %s29 = sadd.s32 1, %s24
      %p30 = scmp.ge.s32.totalorder %s29, 2
      %s31 = scalar_select %p30, 0, %s29
      %s32 = sadd.s32 1, %s23
      %s33 = scalar_select %p30, %s32, %s23
      %p34 = scmp.ge.s32.totalorder %s33, 1
      %s35 = scalar_select %p34, 0, %s33
      %s36 = ssub.s32 %s23, %s35
      %s37 = ssub.s32 %s24, %s31
      %s38 = sor.u32 %s36, %s37
      %p39 = scmp.eq.s32.totalorder %s38, 0
      %s41 = sadd.s32 %s40, 1
      %s42 = scalar_select %p39, %s40, %s41
      %p45 = pneg %p39
      %p46 = scmp.eq.s32.totalorder %s16, 1
      %p47 = por %p45, %p46
      %p48 = scmp.ne.s32.totalorder %s40, %s43
      %p49 = scmp.eq.s32.totalorder %s16, 0
      %p50 = por %p48, %p49
      %p51 = scmp.ne.s32.totalorder %s40, %s43
      %p52 = scmp.eq.s32.totalorder %s21, 1
      %p53 = por %p51, %p52
      %p54 = scmp.ne.s32.totalorder %s43, %s44
      %p55 = scmp.eq.s32.totalorder %s21, 0
      %p56 = por %p54, %p55
      %p57 = scmp.ne.s32.totalorder %s43, %s44
      %p58 = scmp.eq.s32.totalorder %s22, 1
      %p59 = por %p57, %p58
      %p61 = scmp.ne.s32.totalorder %s44, %s60
      %p62 = scmp.eq.s32.totalorder %s22, 0
      %p63 = por %p61, %p62
      %s65 = sadd.s32 %s64, 1
      %p68 = scmp.eq.s32.totalorder %s16, 1
      %p69 = scmp.ne.s32.totalorder %s64, %s66
      %p70 = scmp.eq.s32.totalorder %s16, 0
      %p71 = por %p69, %p70
      %p72 = scmp.ne.s32.totalorder %s64, %s66
      %p73 = scmp.eq.s32.totalorder %s21, 1
      %p74 = por %p72, %p73
      %p75 = scmp.ne.s32.totalorder %s66, %s67
      %p76 = scmp.eq.s32.totalorder %s21, 0
      %p77 = por %p75, %p76
      %p78 = scmp.ne.s32.totalorder %s66, %s67
      %p79 = scmp.eq.s32.totalorder %s22, 1
      %p80 = por %p78, %p79
      %p82 = scmp.ne.s32.totalorder %s67, %s81
      %p83 = scmp.eq.s32.totalorder %s22, 0
      %p84 = por %p82, %p83
      %s86 = sadd.s32 %s85, 1
      %p89 = scmp.eq.s32.totalorder %s16, 1
      %p90 = scmp.ne.s32.totalorder %s85, %s87
      %p91 = scmp.eq.s32.totalorder %s16, 0
      %p92 = por %p90, %p91
      %p93 = scmp.ne.s32.totalorder %s85, %s87
      %p94 = scmp.eq.s32.totalorder %s21, 1
      %p95 = por %p93, %p94
      %p96 = scmp.ne.s32.totalorder %s87, %s88
      %p97 = scmp.eq.s32.totalorder %s21, 0
      %p98 = por %p96, %p97
      %p99 = scmp.ne.s32.totalorder %s87, %s88
      %p100 = scmp.eq.s32.totalorder %s22, 1
      %p101 = por %p99, %p100
      %p103 = scmp.ne.s32.totalorder %s88, %s102
      %p104 = scmp.eq.s32.totalorder %s22, 0
      %p105 = por %p103, %p104
      %s107 = sadd.s32 %s106, 1
      %p110 = scmp.eq.s32.totalorder %s16, 1
      %p111 = scmp.ne.s32.totalorder %s106, %s108
      %p112 = scmp.eq.s32.totalorder %s16, 0
      %p113 = por %p111, %p112
      %p114 = scmp.ne.s32.totalorder %s106, %s108
      %p115 = scmp.eq.s32.totalorder %s21, 1
      %p116 = por %p114, %p115
      %p117 = scmp.ne.s32.totalorder %s108, %s109
      %p118 = scmp.eq.s32.totalorder %s21, 0
      %p119 = por %p117, %p118
      %p120 = scmp.ne.s32.totalorder %s108, %s109
      %p121 = scmp.eq.s32.totalorder %s22, 1
      %p122 = por %p120, %p121
      %p124 = scmp.ne.s32.totalorder %s109, %s123
      %p125 = scmp.eq.s32.totalorder %s22, 0
      %p126 = por %p124, %p125
      %s128 = sadd.s32 %s127, 1
      %p131 = scmp.eq.s32.totalorder %s16, 1
      %p132 = scmp.ne.s32.totalorder %s127, %s129
      %p133 = scmp.eq.s32.totalorder %s16, 0
      %p134 = por %p132, %p133
      %p135 = scmp.ne.s32.totalorder %s127, %s129
      %p136 = scmp.eq.s32.totalorder %s21, 1
      %p137 = por %p135, %p136
      %p138 = scmp.ne.s32.totalorder %s129, %s130
      %p139 = scmp.eq.s32.totalorder %s21, 0
      %p140 = por %p138, %p139
      %p141 = scmp.ne.s32.totalorder %s129, %s130
      %p142 = scmp.eq.s32.totalorder %s22, 1
      %p143 = por %p141, %p142
      %p145 = scmp.ne.s32.totalorder %s130, %s144
      %p146 = scmp.eq.s32.totalorder %s22, 0
      %p147 = por %p145, %p146
      %s149 = sadd.s32 %s148, 1
      %p152 = scmp.eq.s32.totalorder %s16, 1
      %p153 = scmp.ne.s32.totalorder %s148, %s150
      %p154 = scmp.eq.s32.totalorder %s16, 0
      %p155 = por %p153, %p154
      %p156 = scmp.ne.s32.totalorder %s148, %s150
      %p157 = scmp.eq.s32.totalorder %s21, 1
      %p158 = por %p156, %p157
      %p159 = scmp.ne.s32.totalorder %s150, %s151
      %p160 = scmp.eq.s32.totalorder %s21, 0
      %p161 = por %p159, %p160
      %p162 = scmp.ne.s32.totalorder %s150, %s151
      %p163 = scmp.eq.s32.totalorder %s22, 1
      %p164 = por %p162, %p163
      %p166 = scmp.ne.s32.totalorder %s151, %s165
      %p167 = scmp.eq.s32.totalorder %s22, 0
      %p168 = por %p166, %p167
      %s170 = sadd.s32 %s169, 1
      %p173 = scmp.eq.s32.totalorder %s16, 1
      %p174 = scmp.ne.s32.totalorder %s169, %s171
      %p175 = scmp.eq.s32.totalorder %s16, 0
      %p176 = por %p174, %p175
      %p177 = scmp.ne.s32.totalorder %s169, %s171
      %p178 = scmp.eq.s32.totalorder %s21, 1
      %p179 = por %p177, %p178
      %p180 = scmp.ne.s32.totalorder %s171, %s172
      %p181 = scmp.eq.s32.totalorder %s21, 0
      %p182 = por %p180, %p181
      %p183 = scmp.ne.s32.totalorder %s171, %s172
      %p184 = scmp.eq.s32.totalorder %s22, 1
      %p185 = por %p183, %p184
      %p187 = scmp.ne.s32.totalorder %s172, %s186
      %p188 = scmp.eq.s32.totalorder %s22, 0
      %p189 = por %p187, %p188
      %s191 = sadd.s32 %s190, 1
      %p194 = scmp.eq.s32.totalorder %s16, 1
      %p195 = scmp.ne.s32.totalorder %s190, %s192
      %p196 = scmp.eq.s32.totalorder %s16, 0
      %p197 = por %p195, %p196
      %p198 = scmp.ne.s32.totalorder %s190, %s192
      %p199 = scmp.eq.s32.totalorder %s21, 1
      %p200 = por %p198, %p199
      %p201 = scmp.ne.s32.totalorder %s192, %s193
      %p202 = scmp.eq.s32.totalorder %s21, 0
      %p203 = por %p201, %p202
      %p204 = scmp.ne.s32.totalorder %s192, %s193
      %p205 = scmp.eq.s32.totalorder %s22, 1
      %p206 = por %p204, %p205
      %p208 = scmp.ne.s32.totalorder %s193, %s207
      %p209 = scmp.eq.s32.totalorder %s22, 0
      %p210 = por %p208, %p209
      %s212 = sadd.s32 %s211, 1
      %p215 = scmp.eq.s32.totalorder %s16, 1
      %p216 = scmp.ne.s32.totalorder %s211, %s213
      %p217 = scmp.eq.s32.totalorder %s16, 0
      %p218 = por %p216, %p217
      %p219 = scmp.ne.s32.totalorder %s211, %s213
      %p220 = scmp.eq.s32.totalorder %s21, 1
      %p221 = por %p219, %p220
      %p222 = scmp.ne.s32.totalorder %s213, %s214
      %p223 = scmp.eq.s32.totalorder %s21, 0
      %p224 = por %p222, %p223
      %p225 = scmp.ne.s32.totalorder %s213, %s214
      %p226 = scmp.eq.s32.totalorder %s22, 1
      %p227 = por %p225, %p226
      %p229 = scmp.ne.s32.totalorder %s214, %s228
      %p230 = scmp.eq.s32.totalorder %s22, 0
      %p231 = por %p229, %p230
      %s232 = ssub.s32 %s23, %s35
      %p233 = scmp.eq.s32.totalorder %s232, 0
      %s235 = sadd.s32 %s234, 1
      %s236 = scalar_select %p233, %s234, %s235
      %p239 = pneg %p233
      %p240 = scmp.eq.s32.totalorder %s16, 1
      %p241 = por %p239, %p240
      %p242 = scmp.ne.s32.totalorder %s234, %s237
      %p243 = scmp.eq.s32.totalorder %s16, 0
      %p244 = por %p242, %p243
      %p245 = scmp.ne.s32.totalorder %s234, %s237
      %p246 = scmp.eq.s32.totalorder %s21, 1
      %p247 = por %p245, %p246
      %p248 = scmp.ne.s32.totalorder %s237, %s238
      %p249 = scmp.eq.s32.totalorder %s21, 0
      %p250 = por %p248, %p249
      %p251 = scmp.ne.s32.totalorder %s237, %s238
      %p252 = scmp.eq.s32.totalorder %s22, 1
      %p253 = por %p251, %p252
      %p255 = scmp.ne.s32.totalorder %s238, %s254
      %p256 = scmp.eq.s32.totalorder %s22, 0
      %p257 = por %p255, %p256
      %p258 = scmp.le.s32.totalorder 1, %s16
      %p259 = scmp.lt.s32.totalorder %s16, 3
      %p260 = pnand %p258, %p259
      %p261 = pneg %p260
      // Predicated region
      $region9: #{linear_head_forward.1} parent=5 // pred_check
        _
      $region10: #{linear_head_forward.1} parent=5 // pred_check_branch
        %263 = sbr.rel (%p260) target = $region12
      $region11: #{linear_head_forward.1} parent=5 // pred_region
        %s264 = ssub.s32 %s16, 1
        // Predicated region
        $region13: #{linear_head_forward.1} parent=11 // pred_check
          %p265 = pneg %p77
        $region14: #{linear_head_forward.1} parent=11 // pred_check_branch
          %267 = sbr.rel (%p265) target = $region16
        $region15: #{linear_head_forward.1} parent=11 // pred_region
          _
        $region16: #{linear_head_forward.1} parent=11 // pred_fallthru
          _
        // Predicated region
        $region17: #{linear_head_forward.1} parent=11 // pred_check
          %p268 = pneg %p98
        $region18: #{linear_head_forward.1} parent=11 // pred_check_branch
          %270 = sbr.rel (%p268) target = $region20
        $region19: #{linear_head_forward.1} parent=11 // pred_region
          _
        $region20: #{linear_head_forward.1} parent=11 // pred_fallthru
          _
        // Predicated region
        $region21: #{linear_head_forward.1} parent=11 // pred_check
          %p271 = pneg %p119
        $region22: #{linear_head_forward.1} parent=11 // pred_check_branch
          %273 = sbr.rel (%p271) target = $region24
        $region23: #{linear_head_forward.1} parent=11 // pred_region
          _
        $region24: #{linear_head_forward.1} parent=11 // pred_fallthru
          _
        // Predicated region
        $region25: #{linear_head_forward.1} parent=11 // pred_check
          %p274 = pneg %p140
        $region26: #{linear_head_forward.1} parent=11 // pred_check_branch
          %276 = sbr.rel (%p274) target = $region28
        $region27: #{linear_head_forward.1} parent=11 // pred_region
          _
        $region28: #{linear_head_forward.1} parent=11 // pred_fallthru
          _
        // Predicated region
        $region29: #{linear_head_forward.1} parent=11 // pred_check
          %p277 = pneg %p161
        $region30: #{linear_head_forward.1} parent=11 // pred_check_branch
          %279 = sbr.rel (%p277) target = $region32
        $region31: #{linear_head_forward.1} parent=11 // pred_region
          _
        $region32: #{linear_head_forward.1} parent=11 // pred_fallthru
          _
        // Predicated region
        $region33: #{linear_head_forward.1} parent=11 // pred_check
          %p280 = pneg %p182
        $region34: #{linear_head_forward.1} parent=11 // pred_check_branch
          %282 = sbr.rel (%p280) target = $region36
        $region35: #{linear_head_forward.1} parent=11 // pred_region
          _
        $region36: #{linear_head_forward.1} parent=11 // pred_fallthru
          _
        // Predicated region
        $region37: #{linear_head_forward.1} parent=11 // pred_check
          %p283 = pneg %p203
        $region38: #{linear_head_forward.1} parent=11 // pred_check_branch
          %285 = sbr.rel (%p283) target = $region40
        $region39: #{linear_head_forward.1} parent=11 // pred_region
          _
        $region40: #{linear_head_forward.1} parent=11 // pred_fallthru
          _
        // Predicated region
        $region41: #{linear_head_forward.1} parent=11 // pred_check
          %p286 = pneg %p224
        $region42: #{linear_head_forward.1} parent=11 // pred_check_branch
          %288 = sbr.rel (%p286) target = $region44
        $region43: #{linear_head_forward.1} parent=11 // pred_region
          _
        $region44: #{linear_head_forward.1} parent=11 // pred_fallthru
          _
      $region12: #{linear_head_forward.1} parent=5 // pred_fallthru
        _
      %p289 = scmp.lt.s32.totalorder %s16, 2
      // Predicated region
      $region45: #{linear_head_forward.1} parent=5 // pred_check
        %p290 = pneg %p289
      $region46: #{linear_head_forward.1} parent=5 // pred_check_branch
        %292 = sbr.rel (%p290) target = $region48
      $region47: #{linear_head_forward.1} parent=5 // pred_region
        // Predicated region
        $region49: #{linear_head_forward.1} parent=47 // pred_check
          %p293 = pneg %p50
        $region50: #{linear_head_forward.1} parent=47 // pred_check_branch
          %295 = sbr.rel (%p293) target = $region52
        $region51: #{linear_head_forward.1} parent=47 // pred_region
          %s296 = sand.u32 %s40, 1
          %s297 = sand.u32 %s40, 1
          %s298 = smul.addr %s297, 64
          %s299 = scalar_lea.vmem [#allocation3], %s298
          %s300 = smul.u32 2, %s23
          %s301 = smul.addr %s300, 8
          %s302 = sadd.s32 %s24, %s301
          %s303 = smul.addr %s302, 8
          %s304 = scalar_lea.vmem %s0, %s303
          // Predicated region
          $region53: #{linear_head_forward.1} parent=51 // pred_check
            _
          $region54: #{linear_head_forward.1} parent=51 // pred_check_branch
            %306 = sbr.rel (0) target = $region56
          $region55: #{linear_head_forward.1} parent=51 // pred_region
            // Predicated region
            $region57: #{linear_head_forward.1} parent=55 // pred_check
              _
            $region58: #{linear_head_forward.1} parent=55 // pred_check_branch
              %308 = sbr.rel (0) target = $region60
            $region59: #{linear_head_forward.1} parent=55 // pred_region
              // Predicated region
              $region72: #{linear_head_forward.1} parent=59 // pred_check
                _
              $region73: #{linear_head_forward.1} parent=59 // pred_check_branch
                %337 = sbr.rel (0) target = $region75
              $region74: #{linear_head_forward.1} parent=59 // pred_region
                loop: start=0, step=1, limit=1
                $region76: #{linear_head_forward.1} parent=74 // loop_pre_header
                  _
                $region77: #{linear_head_forward.1} parent=74 // loop_header
                  %s339 = sphi 0, %s343
                  %p340 = scmp.ge.s32.totalorder %s339, 1
                  %s344 = sphi %s304, %s304
                  %s345 = sphi %s299, %s299
                $region78: #{linear_head_forward.1} parent=74 // loop_header_branch
                  %342 = sbr.rel (%p340) target = $region82
                $region79: #{linear_head_forward.1} parent=74 // loop_body
                  %v346 = vld [vmem:[%s344] sm:$0xff]
                  %347 = vst [vmem:[%s345] sm:$0xff] %v346
                  %v348 = vld [vmem:[%s344 + $0x10] sm:$0xff]
                  %349 = vst [vmem:[%s345 + $0x8] sm:$0xff] %v348
                  %v350 = vld [vmem:[%s344 + $0x20] sm:$0xff]
                  %351 = vst [vmem:[%s345 + $0x10] sm:$0xff] %v350
                  %v352 = vld [vmem:[%s344 + $0x30] sm:$0xff]
                  %353 = vst [vmem:[%s345 + $0x18] sm:$0xff] %v352
                  %v354 = vld [vmem:[%s344 + $0x40] sm:$0xff]
                  %355 = vst [vmem:[%s345 + $0x20] sm:$0xff] %v354
                  %v356 = vld [vmem:[%s344 + $0x50] sm:$0xff]
                  %357 = vst [vmem:[%s345 + $0x28] sm:$0xff] %v356
                  %v358 = vld [vmem:[%s344 + $0x60] sm:$0xff]
                  %359 = vst [vmem:[%s345 + $0x30] sm:$0xff] %v358
                  %v360 = vld [vmem:[%s344 + $0x70] sm:$0xff]
                  %361 = vst [vmem:[%s345 + $0x38] sm:$0xff] %v360
                $region80: #{linear_head_forward.1} parent=74 // loop_footer
                  %s343 = sadd.s32 1, %s339
                $region81: #{linear_head_forward.1} parent=74 // loop_footer_branch
                  %338 = sbr.rel target = $region77
                $region82: #{linear_head_forward.1} parent=74 // loop_exit
                  _
              $region75: #{linear_head_forward.1} parent=59 // pred_fallthru
                _
              // Predicated region
              $region83: #{linear_head_forward.1} parent=59 // pred_check
                _
              $region84: #{linear_head_forward.1} parent=59 // pred_check_branch
                %363 = sbr.rel target = $region86
              $region85: #{linear_head_forward.1} parent=59 // pred_region
                _
              $region86: #{linear_head_forward.1} parent=59 // pred_fallthru
                _
            $region60: #{linear_head_forward.1} parent=55 // pred_fallthru
              _
            // Predicated region
            $region61: #{linear_head_forward.1} parent=55 // pred_check
              _
            $region62: #{linear_head_forward.1} parent=55 // pred_check_branch
              %310 = sbr.rel target = $region64
            $region63: #{linear_head_forward.1} parent=55 // pred_region
              loop: start=0, step=1, limit=1
              $region65: #{linear_head_forward.1} parent=63 // loop_pre_header
                _
              $region66: #{linear_head_forward.1} parent=63 // loop_header
                %s313 = sphi 0, %s317
                %p314 = scmp.ge.s32.totalorder %s313, 1
                %s318 = sphi %s304, %s304
                %s319 = sphi %s299, %s299
              $region67: #{linear_head_forward.1} parent=63 // loop_header_branch
                %316 = sbr.rel (%p314) target = $region71
              $region68: #{linear_head_forward.1} parent=63 // loop_body
                %v320 = vld [vmem:[%s318] sm:$0xff]
                %321 = vst [vmem:[%s319] sm:$0xff] %v320
                %v322 = vld [vmem:[%s318 + $0x10] sm:$0xff]
                %323 = vst [vmem:[%s319 + $0x8] sm:$0xff] %v322
                %v324 = vld [vmem:[%s318 + $0x20] sm:$0xff]
                %325 = vst [vmem:[%s319 + $0x10] sm:$0xff] %v324
                %v326 = vld [vmem:[%s318 + $0x30] sm:$0xff]
                %327 = vst [vmem:[%s319 + $0x18] sm:$0xff] %v326
                %v328 = vld [vmem:[%s318 + $0x40] sm:$0xff]
                %329 = vst [vmem:[%s319 + $0x20] sm:$0xff] %v328
                %v330 = vld [vmem:[%s318 + $0x50] sm:$0xff]
                %331 = vst [vmem:[%s319 + $0x28] sm:$0xff] %v330
                %v332 = vld [vmem:[%s318 + $0x60] sm:$0xff]
                %333 = vst [vmem:[%s319 + $0x30] sm:$0xff] %v332
                %v334 = vld [vmem:[%s318 + $0x70] sm:$0xff]
                %335 = vst [vmem:[%s319 + $0x38] sm:$0xff] %v334
              $region69: #{linear_head_forward.1} parent=63 // loop_footer
                %s317 = sadd.s32 1, %s313
              $region70: #{linear_head_forward.1} parent=63 // loop_footer_branch
                %312 = sbr.rel target = $region66
              $region71: #{linear_head_forward.1} parent=63 // loop_exit
                _
            $region64: #{linear_head_forward.1} parent=55 // pred_fallthru
              _
          $region56: #{linear_head_forward.1} parent=51 // pred_fallthru
            _
          %364 = vnop
        $region52: #{linear_head_forward.1} parent=47 // pred_fallthru
          _
      $region48: #{linear_head_forward.1} parent=5 // pred_fallthru
        _
      %p365 = scmp.le.s32.totalorder 1, %s16
      %p366 = scmp.lt.s32.totalorder %s16, 3
      %p367 = pnand %p365, %p366
      %p368 = pneg %p367
      // Predicated region
      $region87: #{linear_head_forward.1} parent=5 // pred_check
        _
      $region88: #{linear_head_forward.1} parent=5 // pred_check_branch
        %370 = sbr.rel (%p367) target = $region90
      $region89: #{linear_head_forward.1} parent=5 // pred_region
        %s371 = ssub.s32 %s16, 1
        %s372 = sand.u32 %s43, 1
        %s373 = sand.u32 %s43, 1
        %s374 = smul.addr %s373, 64
        %s375 = scalar_lea.vmem [#allocation3], %s374
        // Predicated region
        $region91: #{linear_head_forward.1} parent=89 // pred_check
          %p376 = pneg %p56
        $region92: #{linear_head_forward.1} parent=89 // pred_check_branch
          %378 = sbr.rel (%p376) target = $region94
        $region93: #{linear_head_forward.1} parent=89 // pred_region
          _
        $region94: #{linear_head_forward.1} parent=89 // pred_fallthru
          _
        %s379 = sand.u32 %s43, 1
        %s380 = sand.u32 %s43, 1
        %s381 = smul.addr %s380, 64
        %s382 = scalar_lea.vmem [#allocation3], %s381
        %p383 = pneg %p56
        %p384 = pneg %p53
        %p385 = pneg %p77
        %p386 = pneg %p74
        %p387 = pneg %p98
        %p388 = pneg %p95
        %p389 = pneg %p119
        %p390 = pneg %p116
        %p391 = pneg %p140
        %p392 = pneg %p137
        %p393 = pneg %p161
        %p394 = pneg %p158
        %p395 = pneg %p182
        %p396 = pneg %p179
        %p397 = pneg %p203
        %p398 = pneg %p200
        %p399 = pneg %p224
        %p400 = pneg %p221
        %p401 = pneg %p250
        %p402 = pneg %p247
        %s403 = smul.u32 2, %s25
        %p404 = scmp.eq.s32.totalorder %s26, 0
        // Predicated region
        $region95: #{linear_head_forward.1} parent=89 // pred_check
          %p405 = pneg %p404
        $region96: #{linear_head_forward.1} parent=89 // pred_check_branch
          %407 = sbr.rel (%p405) target = $region98
        $region97: #{linear_head_forward.1} parent=89 // pred_region
          %vm408 = vcmask 254976
          %409 = vst.msk [vmem:[#allocation2] sm:$0x3] %vm408, 0.0
        $region98: #{linear_head_forward.1} parent=89 // pred_fallthru
          _
        %v410 = vld [vmem:[%s375] sm:$0xff]
        %v411 = vld [vmem:[%s375 + $0x8] sm:$0xff]
        %v412 = vld [vmem:[%s375 + $0x10] sm:$0xff]
        %v413 = vld [vmem:[%s375 + $0x18] sm:$0xff]
        %v414 = vld [vmem:[%s375 + $0x20] sm:$0xff]
        %v415 = vld [vmem:[%s375 + $0x28] sm:$0xff]
        %v416 = vld [vmem:[%s375 + $0x30] sm:$0xff]
        %v417 = vld [vmem:[%s375 + $0x38] sm:$0xff]
        %v418 = vld [vmem:[#allocation2] sm:$0x3]
        %419 = vmatprep.subr.mxu0 0.0
        %420 = vmatpush1.msra.mxu0 1.0
        %421 = vmatprep.subr.mxu0 0.0
        %422 = vmatpush1.msra.mxu0 1.0
        %423 = vmatprep.subr.mxu0 0.0
        %424 = vmatpush1.msra.mxu0 1.0
        %425 = vmatprep.subr.mxu0 0.0
        %426 = vmatpush1.msra.mxu0 1.0
        %427 = vmatprep.subr.mxu0 0.0
        %428 = vmatpush1.msra.mxu0 1.0
        %429 = vmatprep.subr.mxu0 0.0
        %430 = vmatpush1.msra.mxu0 1.0
        %431 = vmatprep.subr.mxu0 0.0
        %432 = vmatpush1.msra.mxu0 1.0
        %433 = vmatprep.subr.mxu0 0.0
        %434 = vmatpush1.msra.mxu0 1.0
        %435 = vmatprep.subr.mxu0 0.0
        %436 = vmatpush1.msra.mxu0 1.0
        %437 = vmatprep.subr.mxu0 0.0
        %438 = vmatpush1.msra.mxu0 1.0
        %439 = vmatprep.subr.mxu0 0.0
        %440 = vmatpush1.msra.mxu0 1.0
        %441 = vmatprep.subr.mxu0 0.0
        %442 = vmatpush1.msra.mxu0 1.0
        %443 = vmatprep.subr.mxu0 0.0
        %444 = vmatpush1.msra.mxu0 1.0
        %445 = vmatprep.subr.mxu0 0.0
        %446 = vmatpush1.msra.mxu0 1.0
        %447 = vmatprep.subr.mxu0 0.0
        %448 = vmatpush1.msra.mxu0 1.0
        %449 = vmatprep.subr.mxu0 0.0
        %450 = vmatpush1.msra.mxu0 1.0
        %451 = vmatprep.subr.mxu0 0.0
        %452 = vmatpush1.msra.mxu0 0.0
        %453 = vmatprep.subr.mxu0 0.0
        %454 = vmatpush1.msra.mxu0 0.0
        %455 = vmatprep.subr.mxu0 0.0
        %456 = vmatpush1.msra.mxu0 0.0
        %457 = vmatprep.subr.mxu0 0.0
        %458 = vmatpush1.msra.mxu0 0.0
        %459 = vmatprep.subr.mxu0 0.0
        %460 = vmatpush1.msra.mxu0 0.0
        %461 = vmatprep.subr.mxu0 0.0
        %462 = vmatpush1.msra.mxu0 0.0
        %463 = vmatprep.subr.mxu0 0.0
        %464 = vmatpush1.msra.mxu0 0.0
        %465 = vmatprep.subr.mxu0 0.0
        %466 = vmatpush1.msra.mxu0 0.0
        %467 = vmatprep.subr.mxu0 0.0
        %468 = vmatpush1.msra.mxu0 0.0
        %469 = vmatprep.subr.mxu0 0.0
        %470 = vmatpush1.msra.mxu0 0.0
        %471 = vmatprep.subr.mxu0 0.0
        %472 = vmatpush1.msra.mxu0 0.0
        %473 = vmatprep.subr.mxu0 0.0
        %474 = vmatpush1.msra.mxu0 0.0
        %475 = vmatprep.subr.mxu0 0.0
        %476 = vmatpush1.msra.mxu0 0.0
        %477 = vmatprep.subr.mxu0 0.0
        %478 = vmatpush1.msra.mxu0 0.0
        %479 = vmatprep.subr.mxu0 0.0
        %480 = vmatpush1.msra.mxu0 0.0
        %481 = vmatprep.subr.mxu0 0.0
        %482 = vmatpush1.msra.mxu0 0.0
        %483 = vmatprep.mubr.f32.mxu0 0.0
        %484 = vmatmul.mubr.f32.gmra.mrb[0].mxu0 %v410
        %v485 = vpop.f32.mrb[0].mxu0
        %v486 = vadd.f32 0.0, %v485
        %v487 = vpop.f32.mrb[0].mxu0
        %488 = vmatprep.mubr.f32.mxu0 0.0
        %489 = vmatmul.mubr.f32.gmra.mrb[0].mxu0 %v411
        %v490 = vpop.f32.mrb[0].mxu0
        %v491 = vadd.f32 0.0, %v490
        %v492 = vpop.f32.mrb[0].mxu0
        %493 = vmatprep.mubr.f32.mxu0 0.0
        %494 = vmatmul.mubr.f32.gmra.mrb[0].mxu0 %v412
        %v495 = vpop.f32.mrb[0].mxu0
        %v496 = vadd.f32 0.0, %v495
        %v497 = vpop.f32.mrb[0].mxu0
        %498 = vmatprep.mubr.f32.mxu0 0.0
        %499 = vmatmul.mubr.f32.gmra.mrb[0].mxu0 %v413
        %v500 = vpop.f32.mrb[0].mxu0
        %v501 = vadd.f32 0.0, %v500
        %v502 = vpop.f32.mrb[0].mxu0
        %503 = vmatprep.mubr.f32.mxu0 0.0
        %504 = vmatmul.mubr.f32.gmra.mrb[0].mxu0 %v414
        %v505 = vpop.f32.mrb[0].mxu0
        %v506 = vadd.f32 0.0, %v505
        %v507 = vpop.f32.mrb[0].mxu0
        %508 = vmatprep.mubr.f32.mxu0 0.0
        %509 = vmatmul.mubr.f32.gmra.mrb[0].mxu0 %v415
        %v510 = vpop.f32.mrb[0].mxu0
        %v511 = vadd.f32 0.0, %v510
        %v512 = vpop.f32.mrb[0].mxu0
        %513 = vmatprep.mubr.f32.mxu0 0.0
        %514 = vmatmul.mubr.f32.gmra.mrb[0].mxu0 %v416
        %v515 = vpop.f32.mrb[0].mxu0
        %v516 = vadd.f32 0.0, %v515
        %v517 = vpop.f32.mrb[0].mxu0
        %518 = vmatprep.mubr.f32.mxu0 0.0
        %519 = vmatmul.mubr.f32.gmra.mrb[0].mxu0 %v417
        %v520 = vpop.f32.mrb[0].mxu0
        %v521 = vadd.f32 0.0, %v520
        %v522 = vpop.f32.mrb[0].mxu0
        %523 = vdwg.mxu0
        %532 = vset.pattern.permute.xlu0 0
        %533 = vperm.xlu0 %532, %v486
        %v534 = vpop.permute.xlu0 %533
        %535 = vset.pattern.permute.xlu0 0
        %536 = vperm.xlu0 %535, %v491
        %v537 = vpop.permute.xlu0 %536
        %538 = vset.pattern.permute.xlu0 0
        %539 = vperm.xlu0 %538, %v496
        %v540 = vpop.permute.xlu0 %539
        %541 = vset.pattern.permute.xlu0 0
        %542 = vperm.xlu0 %541, %v501
        %v543 = vpop.permute.xlu0 %542
        %544 = vset.pattern.permute.xlu0 0
        %545 = vperm.xlu0 %544, %v506
        %v546 = vpop.permute.xlu0 %545
        %547 = vset.pattern.permute.xlu0 0
        %548 = vperm.xlu0 %547, %v511
        %v549 = vpop.permute.xlu0 %548
        %550 = vset.pattern.permute.xlu0 0
        %551 = vperm.xlu0 %550, %v516
        %v552 = vpop.permute.xlu0 %551
        %553 = vset.pattern.permute.xlu0 0
        %554 = vperm.xlu0 %553, %v521
        %v555 = vpop.permute.xlu0 %554
        %v556 = vlaneseq
        %v557 = vand.u32 %v556, 127
        %v558 = vlaneseq
        %v559 = vshrl.u32 %v558, 7
        %v560 = vsub.s32 %v557, %v559
        %v561 = vrot.slane %v534, %v560
        %v562 = vadd.s32 %v557, 4294967288
        %v563 = vlaneseq
        %v564 = vshrl.u32 %v563, 7
        %v565 = vsub.s32 %v562, %v564
        %v566 = vrot.slane %v537, %v565
        %vm567 = vcmask 130112
        %v568 = vsel %vm567, %v566, %v561
        %v569 = vadd.s32 %v557, 4294967280
        %v570 = vlaneseq
        %v571 = vshrl.u32 %v570, 7
        %v572 = vsub.s32 %v569, %v571
        %v573 = vrot.slane %v540, %v572
        %vm574 = vcmask 195712
        %v575 = vsel %vm574, %v573, %v568
        %v576 = vadd.s32 %v557, 4294967272
        %v577 = vlaneseq
        %v578 = vshrl.u32 %v577, 7
        %v579 = vsub.s32 %v576, %v578
        %v580 = vrot.slane %v543, %v579
        %vm581 = vcmask 261312
        %v582 = vsel %vm581, %v580, %v575
        %v583 = vlaneseq
        %v584 = vshrl.u32 %v583, 7
        %v585 = vsub.s32 %v557, %v584
        %v586 = vrot.slane %v546, %v585
        %v587 = vlaneseq
        %v588 = vshrl.u32 %v587, 7
        %v589 = vsub.s32 %v562, %v588
        %v590 = vrot.slane %v549, %v589
        %v591 = vsel %vm567, %v590, %v586
        %v592 = vlaneseq
        %v593 = vshrl.u32 %v592, 7
        %v594 = vsub.s32 %v569, %v593
        %v595 = vrot.slane %v552, %v594
        %v596 = vsel %vm574, %v595, %v591
        %v597 = vlaneseq
        %v598 = vshrl.u32 %v597, 7
        %v599 = vsub.s32 %v576, %v598
        %v600 = vrot.slane %v555, %v599
        %v601 = vsel %vm581, %v600, %v596
        %vm602 = vcmask 1041409
        %v603 = vsel %vm602, %v601, %v582
        %v605 = vadd.f32 %v418, %v603
        %vm606 = vcmask 254976
        %607 = vst.msk [vmem:[#allocation2] sm:$0x3] %vm606, %v605
        %p608 = scmp.eq.s32.totalorder %s26, 1
        // Predicated region
        $region99: #{linear_head_forward.1} parent=89 // pred_check
          %p609 = pneg %p608
        $region100: #{linear_head_forward.1} parent=89 // pred_check_branch
          %611 = sbr.rel (%p609) target = $region102
        $region101: #{linear_head_forward.1} parent=89 // pred_region
          %v612 = vld [vmem:[#allocation2] sm:$0x3]
          %v613 = vmul.f32 %v612, 0.00390625
          %v614 = vld [vmem:[%s1] sm:$0xff]
          %v615 = vld [vmem:[%s1 + $0x8] sm:$0xff]
          %v616 = vld [vmem:[%s1 + $0x10] sm:$0xff]
          %v617 = vld [vmem:[%s1 + $0x18] sm:$0xff]
          %v618 = vld [vmem:[%s1 + $0x20] sm:$0xff]
          %v619 = vld [vmem:[%s1 + $0x28] sm:$0xff]
          %v620 = vld [vmem:[%s1 + $0x30] sm:$0xff]
          %v621 = vld [vmem:[%s1 + $0x38] sm:$0xff]
          %v622 = vld [vmem:[%s2] sm:$0x3]
          %v624 = vlaneseq
          %v625 = vshrl.u32 %v624, 7
          %v626 = vsub.s32 0, %v625
          %v627 = vrot.slane %v622, %v626
          %v628 = vlaneseq
          %v629 = vshrl.u32 %v628, 7
          %v630 = vsub.s32 1, %v629
          %v631 = vrot.slane %v622, %v630
          %vm634 = vcmask 261120
          %v636 = vsel %vm634, %v613, 0
          %638 = vmatprep.subr.mxu0 %v615
          %639 = vmatpush1.msra.mxu0 %v614
          %640 = vmatprep.subr.mxu0 %v617
          %641 = vmatpush1.msra.mxu0 %v616
          %642 = vmatprep.subr.mxu0 %v619
          %643 = vmatpush1.msra.mxu0 %v618
          %644 = vmatprep.subr.mxu0 %v621
          %645 = vmatpush1.msra.mxu0 %v620
          %646 = vmatprep.subr.mxu0 0.0
          %647 = vmatpush1.msra.mxu0 0.0
          %648 = vmatprep.subr.mxu0 0.0
          %649 = vmatpush1.msra.mxu0 0.0
          %650 = vmatprep.subr.mxu0 0.0
          %651 = vmatpush1.msra.mxu0 0.0
          %652 = vmatprep.subr.mxu0 0.0
          %653 = vmatpush1.msra.mxu0 0.0
          %654 = vmatprep.subr.mxu0 0.0
          %655 = vmatpush1.msra.mxu0 0.0
          %656 = vmatprep.subr.mxu0 0.0
          %657 = vmatpush1.msra.mxu0 0.0
          %658 = vmatprep.subr.mxu0 0.0
          %659 = vmatpush1.msra.mxu0 0.0
          %660 = vmatprep.subr.mxu0 0.0
          %661 = vmatpush1.msra.mxu0 0.0
          %662 = vmatprep.subr.mxu0 0.0
          %663 = vmatpush1.msra.mxu0 0.0
          %664 = vmatprep.subr.mxu0 0.0
          %665 = vmatpush1.msra.mxu0 0.0
          %666 = vmatprep.subr.mxu0 0.0
          %667 = vmatpush1.msra.mxu0 0.0
          %668 = vmatprep.subr.mxu0 0.0
          %669 = vmatpush1.msra.mxu0 0.0
          %670 = vmatprep.subr.mxu0 0.0
          %671 = vmatpush1.msra.mxu0 0.0
          %672 = vmatprep.subr.mxu0 0.0
          %673 = vmatpush1.msra.mxu0 0.0
          %674 = vmatprep.subr.mxu0 0.0
          %675 = vmatpush1.msra.mxu0 0.0
          %676 = vmatprep.subr.mxu0 0.0
          %677 = vmatpush1.msra.mxu0 0.0
          %678 = vmatprep.subr.mxu0 0.0
          %679 = vmatpush1.msra.mxu0 0.0
          %680 = vmatprep.subr.mxu0 0.0
          %681 = vmatpush1.msra.mxu0 0.0
          %682 = vmatprep.subr.mxu0 0.0
          %683 = vmatpush1.msra.mxu0 0.0
          %684 = vmatprep.subr.mxu0 0.0
          %685 = vmatpush1.msra.mxu0 0.0
          %686 = vmatprep.subr.mxu0 0.0
          %687 = vmatpush1.msra.mxu0 0.0
          %688 = vmatprep.subr.mxu0 0.0
          %689 = vmatpush1.msra.mxu0 0.0
          %690 = vmatprep.subr.mxu0 0.0
          %691 = vmatpush1.msra.mxu0 0.0
          %692 = vmatprep.subr.mxu0 0.0
          %693 = vmatpush1.msra.mxu0 0.0
          %694 = vmatprep.subr.mxu0 0.0
          %695 = vmatpush1.msra.mxu0 0.0
          %696 = vmatprep.subr.mxu0 0.0
          %697 = vmatpush1.msra.mxu0 0.0
          %698 = vmatprep.subr.mxu0 0.0
          %699 = vmatpush1.msra.mxu0 0.0
          %700 = vmatprep.subr.mxu0 0.0
          %701 = vmatpush1.msra.mxu0 0.0
          %702 = vmatprep.mubr.f32.mxu0 0.0
          %703 = vmatmul.mubr.f32.gmra.mrb[0].mxu0 %v636
          %v704 = vpop.f32.mrb[0].mxu0
          %v705 = vadd.f32 %v627, %v704
          %v706 = vpop.f32.mrb[0].mxu0
          %v707 = vadd.f32 %v631, %v706
          %708 = vdwg.mxu0
          %v709 = vmax.f32 %v705, 0.0
          %v710 = vmax.f32 %v707, 0.0
          %v711 = vld [vmem:[%s3] sm:$0xff]
          %v712 = vld [vmem:[%s3 + $0x8] sm:$0xff]
          %v713 = vld [vmem:[%s3 + $0x10] sm:$0xff]
          %v714 = vld [vmem:[%s3 + $0x18] sm:$0xff]
          %v715 = vld [vmem:[%s3 + $0x20] sm:$0xff]
          %v716 = vld [vmem:[%s3 + $0x28] sm:$0xff]
          %v717 = vld [vmem:[%s3 + $0x30] sm:$0xff]
          %v718 = vld [vmem:[%s3 + $0x38] sm:$0xff]
          %v719 = vld [vmem:[%s3 + $0x40] sm:$0xff]
          %v720 = vld [vmem:[%s3 + $0x48] sm:$0xff]
          %v721 = vld [vmem:[%s3 + $0x50] sm:$0xff]
          %v722 = vld [vmem:[%s3 + $0x58] sm:$0xff]
          %v723 = vld [vmem:[%s3 + $0x60] sm:$0xff]
          %v724 = vld [vmem:[%s3 + $0x68] sm:$0xff]
          %v725 = vld [vmem:[%s3 + $0x70] sm:$0xff]
          %v726 = vld [vmem:[%s3 + $0x78] sm:$0xff]
          %v727 = vld [vmem:[%s3 + $0x80] sm:$0xff]
          %v728 = vld [vmem:[%s3 + $0x88] sm:$0xff]
          %v729 = vld [vmem:[%s3 + $0x90] sm:$0xff]
          %v730 = vld [vmem:[%s3 + $0x98] sm:$0xff]
          %v731 = vld [vmem:[%s3 + $0xa0] sm:$0xff]
          %v732 = vld [vmem:[%s3 + $0xa8] sm:$0xff]
          %v733 = vld [vmem:[%s3 + $0xb0] sm:$0xff]
          %v734 = vld [vmem:[%s3 + $0xb8] sm:$0xff]
          %v735 = vld [vmem:[%s3 + $0xc0] sm:$0xff]
          %v736 = vld [vmem:[%s3 + $0xc8] sm:$0xff]
          %v737 = vld [vmem:[%s3 + $0xd0] sm:$0xff]
          %v738 = vld [vmem:[%s3 + $0xd8] sm:$0xff]
          %v739 = vld [vmem:[%s3 + $0xe0] sm:$0xff]
          %v740 = vld [vmem:[%s3 + $0xe8] sm:$0xff]
          %v741 = vld [vmem:[%s3 + $0xf0] sm:$0xff]
          %v742 = vld [vmem:[%s3 + $0xf8] sm:$0xff]
          %v743 = vld [vmem:[%s4] sm:$0x1]
          %v745 = vlaneseq
          %v746 = vshrl.u32 %v745, 7
          %v747 = vsub.s32 0, %v746
          %v748 = vrot.slane %v743, %v747
          %750 = vmatprep.subr.mxu0 0.0
          %751 = vmatpush1.msra.mxu0 %v711
          %752 = vmatprep.subr.mxu0 0.0
          %753 = vmatpush1.msra.mxu0 %v712
          %754 = vmatprep.subr.mxu0 0.0
          %755 = vmatpush1.msra.mxu0 %v713
          %756 = vmatprep.subr.mxu0 0.0
          %757 = vmatpush1.msra.mxu0 %v714
          %758 = vmatprep.subr.mxu0 0.0
          %759 = vmatpush1.msra.mxu0 %v715
          %760 = vmatprep.subr.mxu0 0.0
          %761 = vmatpush1.msra.mxu0 %v716
          %762 = vmatprep.subr.mxu0 0.0
          %763 = vmatpush1.msra.mxu0 %v717
          %764 = vmatprep.subr.mxu0 0.0
          %765 = vmatpush1.msra.mxu0 %v718
          %766 = vmatprep.subr.mxu0 0.0
          %767 = vmatpush1.msra.mxu0 %v719
          %768 = vmatprep.subr.mxu0 0.0
          %769 = vmatpush1.msra.mxu0 %v720
          %770 = vmatprep.subr.mxu0 0.0
          %771 = vmatpush1.msra.mxu0 %v721
          %772 = vmatprep.subr.mxu0 0.0
          %773 = vmatpush1.msra.mxu0 %v722
          %774 = vmatprep.subr.mxu0 0.0
          %775 = vmatpush1.msra.mxu0 %v723
          %776 = vmatprep.subr.mxu0 0.0
          %777 = vmatpush1.msra.mxu0 %v724
          %778 = vmatprep.subr.mxu0 0.0
          %779 = vmatpush1.msra.mxu0 %v725
          %780 = vmatprep.subr.mxu0 0.0
          %781 = vmatpush1.msra.mxu0 %v726
          %782 = vmatprep.subr.mxu0 0.0
          %783 = vmatpush1.msra.mxu0 %v727
          %784 = vmatprep.subr.mxu0 0.0
          %785 = vmatpush1.msra.mxu0 %v728
          %786 = vmatprep.subr.mxu0 0.0
          %787 = vmatpush1.msra.mxu0 %v729
          %788 = vmatprep.subr.mxu0 0.0
          %789 = vmatpush1.msra.mxu0 %v730
          %790 = vmatprep.subr.mxu0 0.0
          %791 = vmatpush1.msra.mxu0 %v731
          %792 = vmatprep.subr.mxu0 0.0
          %793 = vmatpush1.msra.mxu0 %v732
          %794 = vmatprep.subr.mxu0 0.0
          %795 = vmatpush1.msra.mxu0 %v733
          %796 = vmatprep.subr.mxu0 0.0
          %797 = vmatpush1.msra.mxu0 %v734
          %798 = vmatprep.subr.mxu0 0.0
          %799 = vmatpush1.msra.mxu0 %v735
          %800 = vmatprep.subr.mxu0 0.0
          %801 = vmatpush1.msra.mxu0 %v736
          %802 = vmatprep.subr.mxu0 0.0
          %803 = vmatpush1.msra.mxu0 %v737
          %804 = vmatprep.subr.mxu0 0.0
          %805 = vmatpush1.msra.mxu0 %v738
          %806 = vmatprep.subr.mxu0 0.0
          %807 = vmatpush1.msra.mxu0 %v739
          %808 = vmatprep.subr.mxu0 0.0
          %809 = vmatpush1.msra.mxu0 %v740
          %810 = vmatprep.subr.mxu0 0.0
          %811 = vmatpush1.msra.mxu0 %v741
          %812 = vmatprep.subr.mxu0 0.0
          %813 = vmatpush1.msra.mxu0 %v742
          %814 = vmatprep.mubr.f32.mxu0 %v710
          %815 = vmatmul.mubr.f32.gmra.mrb[0].mxu0 %v709
          %v816 = vpop.f32.mrb[0].mxu0
          %v817 = vadd.f32 %v748, %v816
          %v818 = vpop.f32.mrb[0].mxu0
          %819 = vdwg.mxu0
          %v820 = vmax.f32 %v817, 0.0
          %v821 = vld [vmem:[%s5] sm:$0xff]
          %v822 = vld [vmem:[%s5 + $0x8] sm:$0xff]
          %v823 = vld [vmem:[%s5 + $0x10] sm:$0xff]
          %v824 = vld [vmem:[%s5 + $0x18] sm:$0xff]
          %v825 = vld [vmem:[%s5 + $0x20] sm:$0xff]
          %v826 = vld [vmem:[%s5 + $0x28] sm:$0xff]
          %v827 = vld [vmem:[%s5 + $0x30] sm:$0xff]
          %v828 = vld [vmem:[%s5 + $0x38] sm:$0xff]
          %v829 = vld [vmem:[%s5 + $0x40] sm:$0xff]
          %v830 = vld [vmem:[%s5 + $0x48] sm:$0xff]
          %v831 = vld [vmem:[%s5 + $0x50] sm:$0xff]
          %v832 = vld [vmem:[%s5 + $0x58] sm:$0xff]
          %v833 = vld [vmem:[%s5 + $0x60] sm:$0xff]
          %v834 = vld [vmem:[%s5 + $0x68] sm:$0xff]
          %v835 = vld [vmem:[%s5 + $0x70] sm:$0xff]
          %v836 = vld [vmem:[%s5 + $0x78] sm:$0xff]
          %v837 = vld [vmem:[%s6] sm:$0x1]
          %v839 = vlaneseq
          %v840 = vshrl.u32 %v839, 7
          %v841 = vsub.s32 0, %v840
          %v842 = vrot.slane %v837, %v841
          %844 = vmatprep.subr.mxu0 0.0
          %845 = vmatpush1.msra.mxu0 %v821
          %846 = vmatprep.subr.mxu0 0.0
          %847 = vmatpush1.msra.mxu0 %v822
          %848 = vmatprep.subr.mxu0 0.0
          %849 = vmatpush1.msra.mxu0 %v823
          %850 = vmatprep.subr.mxu0 0.0
          %851 = vmatpush1.msra.mxu0 %v824
          %852 = vmatprep.subr.mxu0 0.0
          %853 = vmatpush1.msra.mxu0 %v825
          %854 = vmatprep.subr.mxu0 0.0
          %855 = vmatpush1.msra.mxu0 %v826
          %856 = vmatprep.subr.mxu0 0.0
          %857 = vmatpush1.msra.mxu0 %v827
          %858 = vmatprep.subr.mxu0 0.0
          %859 = vmatpush1.msra.mxu0 %v828
          %860 = vmatprep.subr.mxu0 0.0
          %861 = vmatpush1.msra.mxu0 %v829
          %862 = vmatprep.subr.mxu0 0.0
          %863 = vmatpush1.msra.mxu0 %v830
          %864 = vmatprep.subr.mxu0 0.0
          %865 = vmatpush1.msra.mxu0 %v831
          %866 = vmatprep.subr.mxu0 0.0
          %867 = vmatpush1.msra.mxu0 %v832
          %868 = vmatprep.subr.mxu0 0.0
          %869 = vmatpush1.msra.mxu0 %v833
          %870 = vmatprep.subr.mxu0 0.0
          %871 = vmatpush1.msra.mxu0 %v834
          %872 = vmatprep.subr.mxu0 0.0
          %873 = vmatpush1.msra.mxu0 %v835
          %874 = vmatprep.subr.mxu0 0.0
          %875 = vmatpush1.msra.mxu0 %v836
          %876 = vmatprep.subr.mxu0 0.0
          %877 = vmatpush1.msra.mxu0 0.0
          %878 = vmatprep.subr.mxu0 0.0
          %879 = vmatpush1.msra.mxu0 0.0
          %880 = vmatprep.subr.mxu0 0.0
          %881 = vmatpush1.msra.mxu0 0.0
          %882 = vmatprep.subr.mxu0 0.0
          %883 = vmatpush1.msra.mxu0 0.0
          %884 = vmatprep.subr.mxu0 0.0
          %885 = vmatpush1.msra.mxu0 0.0
          %886 = vmatprep.subr.mxu0 0.0
          %887 = vmatpush1.msra.mxu0 0.0
          %888 = vmatprep.subr.mxu0 0.0
          %889 = vmatpush1.msra.mxu0 0.0
          %890 = vmatprep.subr.mxu0 0.0
          %891 = vmatpush1.msra.mxu0 0.0
          %892 = vmatprep.subr.mxu0 0.0
          %893 = vmatpush1.msra.mxu0 0.0
          %894 = vmatprep.subr.mxu0 0.0
          %895 = vmatpush1.msra.mxu0 0.0
          %896 = vmatprep.subr.mxu0 0.0
          %897 = vmatpush1.msra.mxu0 0.0
          %898 = vmatprep.subr.mxu0 0.0
          %899 = vmatpush1.msra.mxu0 0.0
          %900 = vmatprep.subr.mxu0 0.0
          %901 = vmatpush1.msra.mxu0 0.0
          %902 = vmatprep.subr.mxu0 0.0
          %903 = vmatpush1.msra.mxu0 0.0
          %904 = vmatprep.subr.mxu0 0.0
          %905 = vmatpush1.msra.mxu0 0.0
          %906 = vmatprep.subr.mxu0 0.0
          %907 = vmatpush1.msra.mxu0 0.0
          %908 = vmatprep.mubr.f32.mxu0 0.0
          %909 = vmatmul.mubr.f32.gmra.mrb[0].mxu0 %v820
          %v910 = vpop.f32.mrb[0].mxu0
          %v911 = vadd.f32 %v842, %v910
          %v912 = vpop.f32.mrb[0].mxu0
          %913 = vdwg.mxu0
          %v914 = vld [vmem:[%s7] sm:$0xff]
          %v915 = vld [vmem:[%s7 + $0x8] sm:$0xff]
          %v916 = vld [vmem:[%s7 + $0x10] sm:$0xff]
          %v917 = vld [vmem:[%s7 + $0x18] sm:$0xff]
          %v918 = vld [vmem:[%s7 + $0x20] sm:$0xff]
          %v919 = vld [vmem:[%s7 + $0x28] sm:$0xff]
          %v920 = vld [vmem:[%s7 + $0x30] sm:$0xff]
          %v921 = vld [vmem:[%s7 + $0x38] sm:$0xff]
          %v922 = vld [vmem:[%s8] sm:$0x1]
          %v924 = vlaneseq
          %v925 = vshrl.u32 %v924, 7
          %v926 = vsub.s32 0, %v925
          %v927 = vrot.slane %v922, %v926
          %vm929 = vcmask 523264
          %v931 = vsel %vm929, %v911, 0
          %933 = vmatprep.subr.mxu0 0.0
          %934 = vmatpush1.msra.mxu0 %v914
          %935 = vmatprep.subr.mxu0 0.0
          %936 = vmatpush1.msra.mxu0 %v915
          %937 = vmatprep.subr.mxu0 0.0
          %938 = vmatpush1.msra.mxu0 %v916
          %939 = vmatprep.subr.mxu0 0.0
          %940 = vmatpush1.msra.mxu0 %v917
          %941 = vmatprep.subr.mxu0 0.0
          %942 = vmatpush1.msra.mxu0 %v918
          %943 = vmatprep.subr.mxu0 0.0
          %944 = vmatpush1.msra.mxu0 %v919
          %945 = vmatprep.subr.mxu0 0.0
          %946 = vmatpush1.msra.mxu0 %v920
          %947 = vmatprep.subr.mxu0 0.0
          %948 = vmatpush1.msra.mxu0 %v921
          %949 = vmatprep.subr.mxu0 0.0
          %950 = vmatpush1.msra.mxu0 0.0
          %951 = vmatprep.subr.mxu0 0.0
          %952 = vmatpush1.msra.mxu0 0.0
          %953 = vmatprep.subr.mxu0 0.0
          %954 = vmatpush1.msra.mxu0 0.0
          %955 = vmatprep.subr.mxu0 0.0
          %956 = vmatpush1.msra.mxu0 0.0
          %957 = vmatprep.subr.mxu0 0.0
          %958 = vmatpush1.msra.mxu0 0.0
          %959 = vmatprep.subr.mxu0 0.0
          %960 = vmatpush1.msra.mxu0 0.0
          %961 = vmatprep.subr.mxu0 0.0
          %962 = vmatpush1.msra.mxu0 0.0
          %963 = vmatprep.subr.mxu0 0.0
          %964 = vmatpush1.msra.mxu0 0.0
          %965 = vmatprep.subr.mxu0 0.0
          %966 = vmatpush1.msra.mxu0 0.0
          %967 = vmatprep.subr.mxu0 0.0
          %968 = vmatpush1.msra.mxu0 0.0
          %969 = vmatprep.subr.mxu0 0.0
          %970 = vmatpush1.msra.mxu0 0.0
          %971 = vmatprep.subr.mxu0 0.0
          %972 = vmatpush1.msra.mxu0 0.0
          %973 = vmatprep.subr.mxu0 0.0
          %974 = vmatpush1.msra.mxu0 0.0
          %975 = vmatprep.subr.mxu0 0.0
          %976 = vmatpush1.msra.mxu0 0.0
          %977 = vmatprep.subr.mxu0 0.0
          %978 = vmatpush1.msra.mxu0 0.0
          %979 = vmatprep.subr.mxu0 0.0
          %980 = vmatpush1.msra.mxu0 0.0
          %981 = vmatprep.subr.mxu0 0.0
          %982 = vmatpush1.msra.mxu0 0.0
          %983 = vmatprep.subr.mxu0 0.0
          %984 = vmatpush1.msra.mxu0 0.0
          %985 = vmatprep.subr.mxu0 0.0
          %986 = vmatpush1.msra.mxu0 0.0
          %987 = vmatprep.subr.mxu0 0.0
          %988 = vmatpush1.msra.mxu0 0.0
          %989 = vmatprep.subr.mxu0 0.0
          %990 = vmatpush1.msra.mxu0 0.0
          %991 = vmatprep.subr.mxu0 0.0
          %992 = vmatpush1.msra.mxu0 0.0
          %993 = vmatprep.subr.mxu0 0.0
          %994 = vmatpush1.msra.mxu0 0.0
          %995 = vmatprep.subr.mxu0 0.0
          %996 = vmatpush1.msra.mxu0 0.0
          %997 = vmatprep.mubr.f32.mxu0 0.0
          %998 = vmatmul.mubr.f32.gmra.mrb[0].mxu0 %v931
          %v999 = vpop.f32.mrb[0].mxu0
          %v1000 = vadd.f32 %v927, %v999
          %v1001 = vpop.f32.mrb[0].mxu0
          %1002 = vdwg.mxu0
          %vm1003 = vcmask 58368
          %v1004 = vsel %vm1003, %v1000, -inf
          %1005 = vmax.xlane.f32.xlu0 %v1004
          %v1006 = vpop.xlane.xlu0 %1005
          %v1007 = vsub.f32 %v1000, %v1006
          %v1008 = vmul.f32 %v1007, 1.442695
          %v1009 = vpow.pop %v1008
          %v1010 = vsel %vm1003, %v1009, 0.0
          %1011 = vadd.xlane.f32.xlu0 %v1010
          %v1012 = vpop.xlane.xlu0 %1011
          %v1013 = vrcp.pop %v1012
          %v1014 = vmul.f32 %v1009, %v1013
          %1015 = vst.msk [vmem:[#allocation4] sm:$0x3] %vm1003, %v1014
        $region102: #{linear_head_forward.1} parent=89 // pred_fallthru
          _
        // Predicated region
        $region103: #{linear_head_forward.1} parent=89 // pred_check
          %p1016 = pneg %p247
        $region104: #{linear_head_forward.1} parent=89 // pred_check_branch
          %1018 = sbr.rel (%p1016) target = $region106
        $region105: #{linear_head_forward.1} parent=89 // pred_region
          %s1020 = ssub.s32 32, 32
          %1021 = vsyncadd [#allocation5], %s1020
          %s1022 = smul.addr %s25, 32
          %s1023 = scalar_lea.hbm %s9, %s1022
          %s1025 = sshll.u32 [#allocation4], 4
          %s1026 = int_to_ptr.vmem [resolvable:$true] %s1025
          %1028 = dma.vmem_to_hbm [thread:$0]  %s1026, 32, %s1023, [#allocation5]
        $region106: #{linear_head_forward.1} parent=89 // pred_fallthru
          _
        // Predicated region
        $region107: #{linear_head_forward.1} parent=89 // pred_check
          %p1029 = pneg %p247
        $region108: #{linear_head_forward.1} parent=89 // pred_check_branch
          %1031 = sbr.rel (%p1029) target = $region110
        $region109: #{linear_head_forward.1} parent=89 // pred_region
          %1032 = dma.done [#allocation5], 32
        $region110: #{linear_head_forward.1} parent=89 // pred_fallthru
          _
      $region90: #{linear_head_forward.1} parent=5 // pred_fallthru
        _
      %p1033 = scmp.le.s32.totalorder 2, %s16
      // Predicated region
      $region111: #{linear_head_forward.1} parent=5 // pred_check
        %p1034 = pneg %p1033
      $region112: #{linear_head_forward.1} parent=5 // pred_check_branch
        %1036 = sbr.rel (%p1034) target = $region114
      $region113: #{linear_head_forward.1} parent=5 // pred_region
        %s1037 = ssub.s32 %s16, 2
      $region114: #{linear_head_forward.1} parent=5 // pred_fallthru
        _
    $region6: #{linear_head_forward.1} parent=1 // loop_footer
      %s20 = sadd.s32 1, %s16
    $region7: #{linear_head_forward.1} parent=1 // loop_footer_branch
      %15 = sbr.rel target = $region3
    $region8: #{linear_head_forward.1} parent=1 // loop_exit
      _
    %1038 = vsyncpa [#allocation5], 1
    %s1039 = scalar_lea.sflag [#allocation5], 1
    %1040 = vsyncpa %s1039, 1

</llo_original>
